<compile_context>
chip_gen: v6e
topology: v6e:2x2x1
jax: 0.10.0
libtpu: 0.0.40
codegen_flags: <defaults>
</compile_context>

<pallas_src>
import collections

import jax
import jax.numpy as jnp
from jax.experimental import pallas as pl
from jax.experimental.pallas import tpu as pltpu

LANE = 128


def _round_up(x, m):
    return ((x + m - 1) // m) * m


Plan = collections.namedtuple(
    "Plan",
    ["mode", "n_pad", "tm", "tk", "f_pad", "h_pad", "c_out_pad", "g_pad",
     "use_xw1", "vmem_limit"],
)


def make_plan(n, c_in, hid, c_out, g):
    """Pick padded dims + tile plan, gated on the TPU generation's VMEM."""
    try:
        phys = getattr(pltpu.get_tpu_info(), "vmem_capacity_bytes",
                       64 * 1024 * 1024)
    except Exception:  # pragma: no cover - conservative fallback
        phys = 64 * 1024 * 1024
    # v5e/v6e (128 MiB physical) -> 64 MiB scoped; v7x (64 MiB) -> 32 MiB.
    vmem_limit = 64 * 1024 * 1024 if phys >= 128 * 1024 * 1024 else 32 * 1024 * 1024
    budget = int(vmem_limit * 0.7)  # headroom for compiler temporaries

    c_in_pad = _round_up(c_in, LANE)
    h_pad = _round_up(hid, LANE)
    use_xw1 = c_in_pad > h_pad            # dim-aware algebraic reorder
    f_pad = h_pad if use_xw1 else c_in_pad
    c_out_pad = _round_up(c_out, LANE)
    g_pad = _round_up(g, 16)
    n128 = _round_up(n, LANE)

    # --- preferred path: 1-D grid over full (tm, n_pad) row strips ---------
    # bytes independent of tm (2x buffered where BlockSpec'd)
    fixed = (4 * n128 * f_pad            # resident F (bf16, 2 buffers)
             + 4 * f_pad * h_pad         # M / W1
             + 8 * h_pad                 # b1 (f32)
             + 4 * h_pad * c_out_pad     # W2^T
             + 8 * g_pad * c_out_pad)    # out block (f32, 2 buffers)
    per_row = (4 * n128                  # A row strip (bf16, 2 buffers)
               + 4 * g_pad               # P columns (bf16, 2 buffers)
               + 4 * f_pad + 4 * h_pad)  # f32 intermediates (A@F, h)
    tm_max = (budget - fixed) // per_row if budget > fixed else 0
    tm_max = min(tm_max, 1024)

    if tm_max >= LANE:
        r = n128 // LANE
        best = 1
        for j in range(1, r + 1):
            # largest 128-multiple divisor of n_pad; when n_pad >= 256 force a
            # proper divisor so n_i >= 2 (both v7x TensorCores engaged).
            if r % j == 0 and j * LANE <= tm_max and (j < r or r == 1):
                best = max(best, j)
        tm = best * LANE
        return Plan("strip", n128, tm, n128, f_pad, h_pad, c_out_pad, g_pad,
                    use_xw1, vmem_limit)

    # --- fallback: 2-D grid (row tiles x reduction tiles), F streamed ------
    for tm, tk in ((1024, 1024), (512, 1024), (256, 512), (128, 256), (128, 128)):
        need = (4 * tm * tk + 4 * tk * f_pad + 4 * tm * f_pad   # A, F, acc
                + 4 * g_pad * tm + 4 * f_pad * h_pad
                + 4 * h_pad * c_out_pad + 8 * g_pad * c_out_pad + 8 * h_pad)
        if need <= budget:
            n_pad = _round_up(n, max(tm, tk))
            return Plan("tiled", n_pad, tm, tk, f_pad, h_pad, c_out_pad, g_pad,
                        use_xw1, vmem_limit)
    raise ValueError("no feasible tile plan for this VMEM budget")


# ---------------------------------------------------------------------------
# kernels
# ---------------------------------------------------------------------------
def _gcn_rowstrip_kernel(a_ref, f_ref, m_ref, b1_ref, p_ref, w2t_ref, out_ref):
    """1-D grid over row strips: a_ref (tm, n_pad), f_ref resident (n_pad, f)."""
    # NOTE: the (A@F) f32 result is re-quantized to bf16 before the M matmul;
    # acceptable at bf16-operand tolerance (see reference check).
    af = jnp.dot(a_ref[...], f_ref[...], preferred_element_type=jnp.float32)
    h = jnp.dot(af.astype(jnp.bfloat16), m_ref[...],
                preferred_element_type=jnp.float32)
    h = jnp.maximum(h + b1_ref[...], 0.0)
    # dropout(p, training=False) -> identity.
    pooled = jnp.dot(p_ref[...], h.astype(jnp.bfloat16),
                     preferred_element_type=jnp.float32)
    out_ref[0] = jnp.dot(pooled.astype(jnp.bfloat16), w2t_ref[...],
                         preferred_element_type=jnp.float32)


def _gcn_tiled_kernel(a_ref, f_ref, m_ref, b1_ref, p_ref, w2t_ref, out_ref,
                      acc_ref):
    """Fallback 2-D grid = (row tiles, reduction tiles) with VMEM accumulator."""
    k = pl.program_id(1)

    @pl.when(k == 0)
    def _():
        acc_ref[...] = jnp.zeros_like(acc_ref)

    acc_ref[...] += jnp.dot(a_ref[...], f_ref[...],
                            preferred_element_type=jnp.float32)

    @pl.when(k == pl.num_programs(1) - 1)
    def _():
        h = jnp.dot(acc_ref[...].astype(jnp.bfloat16), m_ref[...],
                    preferred_element_type=jnp.float32)
        h = jnp.maximum(h + b1_ref[...], 0.0)
        pooled = jnp.dot(p_ref[...], h.astype(jnp.bfloat16),
                         preferred_element_type=jnp.float32)
        out_ref[0] = jnp.dot(pooled.astype(jnp.bfloat16), w2t_ref[...],
                             preferred_element_type=jnp.float32)


# ---------------------------------------------------------------------------
# wrapper
# ---------------------------------------------------------------------------
def simple_gcn_forward(x, a_pad, pool_mat, w1, b1, w2t, b2, plan):
    """x:(N,C_in) f32, a_pad:(n_pad,n_pad) bf16 pre-padded, pool_mat:(G,N) f32."""
    n, c_in = x.shape
    g = pool_mat.shape[0]
    hid = w1.shape[1]
    c_out = w2t.shape[1]

    n_pad, tm, tk = plan.n_pad, plan.tm, plan.tk
    f_pad, h_pad = plan.f_pad, plan.h_pad
    c_out_pad, g_pad = plan.c_out_pad, plan.g_pad
    bf = jnp.bfloat16

    if a_pad.shape != (n_pad, n_pad) or a_pad.dtype != bf:
        raise ValueError("a_pad must be pre-padded bf16 of shape "
                         f"({n_pad},{n_pad}); got {a_pad.shape} {a_pad.dtype}")

    # Small per-call pads (O(N*128) or less; the big A pad/cast is build-time).
    if plan.use_xw1:
        # Stream the narrower (N, h_pad) operand: precompute x@W1 (tiny),
        # kernel applies identity in place of W1.
        z = x @ w1
        f_mat = jnp.zeros((n_pad, f_pad), bf).at[:n, :hid].set(z.astype(bf))
        m_mat = jnp.zeros((f_pad, h_pad), bf).at[:hid, :hid].set(
            jnp.eye(hid, dtype=bf))
    else:
        f_mat = jnp.zeros((n_pad, f_pad), bf).at[:n, :c_in].set(x.astype(bf))
        m_mat = jnp.zeros((f_pad, h_pad), bf).at[:c_in, :hid].set(w1.astype(bf))
    b1_p = jnp.zeros((1, h_pad), jnp.float32).at[:, :hid].set(b1)
    p_p = jnp.zeros((g_pad, n_pad), bf).at[:g, :n].set(pool_mat.astype(bf))
    w2t_p = jnp.zeros((h_pad, c_out_pad), bf).at[:hid, :c_out].set(w2t.astype(bf))

    n_i = n_pad // tm

    if plan.mode == "strip":
        partials = pl.pallas_call(
            _gcn_rowstrip_kernel,
            out_shape=jax.ShapeDtypeStruct((n_i, g_pad, c_out_pad), jnp.float32),
            grid_spec=pltpu.PrefetchScalarGridSpec(
                num_scalar_prefetch=0,
                grid=(n_i,),
                in_specs=[
                    pl.BlockSpec((tm, n_pad), lambda i: (i, 0)),        # A strip
                    pl.BlockSpec((n_pad, f_pad), lambda i: (0, 0)),     # F resident
                    pl.BlockSpec((f_pad, h_pad), lambda i: (0, 0)),     # W1 / I
                    pl.BlockSpec((1, h_pad), lambda i: (0, 0)),         # b1
                    pl.BlockSpec((g_pad, tm), lambda i: (0, i)),        # P cols
                    pl.BlockSpec((h_pad, c_out_pad), lambda i: (0, 0)), # W2^T
                ],
                out_specs=pl.BlockSpec((1, g_pad, c_out_pad),
                                       lambda i: (i, 0, 0)),
            ),
            compiler_params=pltpu.CompilerParams(
                dimension_semantics=("parallel",),
                vmem_limit_bytes=plan.vmem_limit,
            ),
        )(a_pad, f_mat, m_mat, b1_p, p_p, w2t_p)
    else:
        n_k = n_pad // tk
        partials = pl.pallas_call(
            _gcn_tiled_kernel,
            out_shape=jax.ShapeDtypeStruct((n_i, g_pad, c_out_pad), jnp.float32),
            grid_spec=pltpu.PrefetchScalarGridSpec(
                num_scalar_prefetch=0,
                grid=(n_i, n_k),
                in_specs=[
                    pl.BlockSpec((tm, tk), lambda i, k: (i, k)),            # A
                    pl.BlockSpec((tk, f_pad), lambda i, k: (k, 0)),         # F
                    pl.BlockSpec((f_pad, h_pad), lambda i, k: (0, 0)),      # W1/I
                    pl.BlockSpec((1, h_pad), lambda i, k: (0, 0)),          # b1
                    pl.BlockSpec((g_pad, tm), lambda i, k: (0, i)),         # P
                    pl.BlockSpec((h_pad, c_out_pad), lambda i, k: (0, 0)),  # W2^T
                ],
                out_specs=pl.BlockSpec((1, g_pad, c_out_pad),
                                       lambda i, k: (i, 0, 0)),
                scratch_shapes=[pltpu.VMEM((tm, f_pad), jnp.float32)],
            ),
            compiler_params=pltpu.CompilerParams(
                dimension_semantics=("parallel", "arbitrary"),
                vmem_limit_bytes=plan.vmem_limit,
            ),
        )(a_pad, f_mat, m_mat, b1_p, p_p, w2t_p)

    # Tiny epilogue: sum per-row-strip pooled partials, add bias, drop padding.
    return partials.sum(axis=0)[:g, :c_out] + b2


# ---------------------------------------------------------------------------
# graph-structure builders
# ---------------------------------------------------------------------------
def build_normalized_adjacency(edge_index, num_nodes):
    """Dense D^-1/2 (A + I) D^-1/2 matching torch_geometric GCNConv defaults."""
    src, dst = edge_index[0], edge_index[1]
    a = jnp.zeros((num_nodes, num_nodes), jnp.float32)
    a = a.at[dst, src].add(1.0)                        # A[target, source]
    a = a + jnp.eye(num_nodes, dtype=jnp.float32)      # self-loops
    deg = a.sum(axis=1)
    dinv = jnp.where(deg > 0, 1.0 / jnp.sqrt(deg), 0.0)
    return dinv[:, None] * a * dinv[None, :]


def pad_adjacency_bf16(a_hat, n_pad):
    """Build-time (one-off) pad + bf16 cast of A_hat; cache across forwards."""
    n = a_hat.shape[0]
    return jnp.zeros((n_pad, n_pad), jnp.bfloat16).at[:n, :n].set(
        a_hat.astype(jnp.bfloat16))


def build_pool_matrix(batch, num_graphs, num_nodes):
    onehot = (batch[None, :] == jnp.arange(num_graphs)[:, None]).astype(jnp.float32)
    counts = onehot.sum(axis=1, keepdims=True)
    return onehot / jnp.maximum(counts, 1.0)


if __name__ == "__main__":
    # Small deterministic problem: 2 graphs, 8 nodes each.
    N = 16          # total nodes
    C_IN = 4        # in_channels
    HID = 32        # hidden_dim
    C_OUT = 8       # out_channels
    G = 2           # number of graphs in the batch

    key = jax.random.PRNGKey(0)
    kx, kw1, kb1, kw2, kb2 = jax.random.split(key, 5)

    # node features
    x = jax.random.normal(kx, (N, C_IN), jnp.float32)

    # deterministic ring edges inside each graph (undirected -> both directions)
    src_list, dst_list = [], []
    for gi in range(G):
        base = gi * (N // G)
        for i in range(N // G):
            a_ = base + i
            b_ = base + (i + 1) % (N // G)
            src_list += [a_, b_]
            dst_list += [b_, a_]
    edge_index = jnp.array([src_list, dst_list], dtype=jnp.int32)

    # graph assignment per node
    batch = jnp.repeat(jnp.arange(G, dtype=jnp.int32), N // G)

    # deterministic parameters (shapes from SimpleGCN.__init__)
    w1 = jax.random.normal(kw1, (C_IN, HID), jnp.float32) * 0.1   # GCNConv weight
    b1 = jax.random.normal(kb1, (1, HID), jnp.float32) * 0.1      # GCNConv bias
    w2 = jax.random.normal(kw2, (C_OUT, HID), jnp.float32) * 0.1  # nn.Linear weight
    b2 = jax.random.normal(kb2, (1, C_OUT), jnp.float32) * 0.1    # nn.Linear bias

    a_hat = build_normalized_adjacency(edge_index, N)
    pool_mat = build_pool_matrix(batch, G, N)

    plan = make_plan(N, C_IN, HID, C_OUT, G)
    # Pad + cast A_hat to bf16 ONCE (build time), not per forward call.
    a_pad = pad_adjacency_bf16(a_hat, plan.n_pad)

    out = simple_gcn_forward(x, a_pad, pool_mat, w1, b1, w2.T, b2, plan)
    jax.block_until_ready(out)

    # pure-JAX f32 reference check (bf16 operands -> loosened tolerance)
    h_ref = jnp.maximum(a_hat @ (x @ w1) + b1, 0.0)
    ref = (pool_mat @ h_ref) @ w2.T + b2
    assert out.shape == (G, C_OUT)
    assert jnp.allclose(out, ref, atol=2e-2, rtol=2e-2), "mismatch vs reference"

    print("KERNEL_OK")
</pallas_src>

<mosaic_0001>
module attributes {stable_mosaic.version = 11 : i64} {
  func.func @_gcn_rowstrip_kernel(%arg0: i32, %arg1: memref<128x128xbf16, #tpu.memory_space<vmem>>, %arg2: memref<128x128xbf16, #tpu.memory_space<vmem>>, %arg3: memref<128x128xbf16, #tpu.memory_space<vmem>>, %arg4: memref<1x128xf32, #tpu.memory_space<vmem>>, %arg5: memref<16x128xbf16, #tpu.memory_space<vmem>>, %arg6: memref<128x128xbf16, #tpu.memory_space<vmem>>, %arg7: memref<1x16x128xf32, #tpu.memory_space<vmem>>) attributes {dimension_semantics = [#tpu.dimension_semantics<parallel>], iteration_bounds = array<i64: 1>, scalar_prefetch = 0 : i64, scratch_operands = 0 : i64, tpu.core_type = #tpu.core_type<tc>, window_params = [{transform_indices = @transform_0, window_bounds = array<i64: 128, 128>}, {pipeline_mode = #tpu.pipeline_mode<synchronous>, transform_indices = @transform_1, window_bounds = array<i64: 128, 128>}, {pipeline_mode = #tpu.pipeline_mode<synchronous>, transform_indices = @transform_2, window_bounds = array<i64: 128, 128>}, {pipeline_mode = #tpu.pipeline_mode<synchronous>, transform_indices = @transform_3, window_bounds = array<i64: 1, 128>}, {transform_indices = @transform_4, window_bounds = array<i64: 16, 128>}, {pipeline_mode = #tpu.pipeline_mode<synchronous>, transform_indices = @transform_5, window_bounds = array<i64: 128, 128>}, {transform_indices = @transform_6, window_bounds = array<i64: 1, 16, 128>}]} {
    %c0 = arith.constant 0 : index
    %c0_0 = arith.constant 0 : index
    %0 = vector.load %arg1[%c0, %c0_0] : memref<128x128xbf16, #tpu.memory_space<vmem>>, vector<128x128xbf16>
    %c0_1 = arith.constant 0 : index
    %c0_2 = arith.constant 0 : index
    %1 = vector.load %arg2[%c0_1, %c0_2] : memref<128x128xbf16, #tpu.memory_space<vmem>>, vector<128x128xbf16>
    %cst = arith.constant dense<0.000000e+00> : vector<128x128xf32>
    %2 = tpu.matmul %0, %1, %cst {dimension_numbers = #tpu.dot_dimension_numbers<[1], [0], [0], [1], [0, 0, 1, 1], [], []>} : vector<128x128xbf16>, vector<128x128xbf16>, vector<128x128xf32> -> vector<128x128xf32>
    %3 = arith.truncf %2 : vector<128x128xf32> to vector<128x128xbf16>
    %c0_3 = arith.constant 0 : index
    %c0_4 = arith.constant 0 : index
    %4 = vector.load %arg3[%c0_3, %c0_4] : memref<128x128xbf16, #tpu.memory_space<vmem>>, vector<128x128xbf16>
    %cst_5 = arith.constant dense<0.000000e+00> : vector<128x128xf32>
    %5 = tpu.matmul %3, %4, %cst_5 {dimension_numbers = #tpu.dot_dimension_numbers<[1], [0], [0], [1], [0, 0, 1, 1], [], []>} : vector<128x128xbf16>, vector<128x128xbf16>, vector<128x128xf32> -> vector<128x128xf32>
    %c0_6 = arith.constant 0 : index
    %c0_7 = arith.constant 0 : index
    %6 = vector.load %arg4[%c0_6, %c0_7] : memref<1x128xf32, #tpu.memory_space<vmem>>, vector<1x128xf32>
    %7 = vector.broadcast %6 : vector<1x128xf32> to vector<128x128xf32>
    %8 = arith.addf %5, %7 : vector<128x128xf32>
    %cst_8 = arith.constant 0.000000e+00 : f32
    %9 = vector.broadcast %cst_8 : f32 to vector<128x128xf32>
    %10 = arith.maximumf %8, %9 : vector<128x128xf32>
    %c0_9 = arith.constant 0 : index
    %c0_10 = arith.constant 0 : index
    %11 = vector.load %arg5[%c0_9, %c0_10] : memref<16x128xbf16, #tpu.memory_space<vmem>>, vector<16x128xbf16>
    %12 = arith.truncf %10 : vector<128x128xf32> to vector<128x128xbf16>
    %cst_11 = arith.constant dense<0.000000e+00> : vector<16x128xf32>
    %13 = tpu.matmul %11, %12, %cst_11 {dimension_numbers = #tpu.dot_dimension_numbers<[1], [0], [0], [1], [0, 0, 1, 1], [], []>} : vector<16x128xbf16>, vector<128x128xbf16>, vector<16x128xf32> -> vector<16x128xf32>
    %14 = arith.truncf %13 : vector<16x128xf32> to vector<16x128xbf16>
    %c0_12 = arith.constant 0 : index
    %c0_13 = arith.constant 0 : index
    %15 = vector.load %arg6[%c0_12, %c0_13] : memref<128x128xbf16, #tpu.memory_space<vmem>>, vector<128x128xbf16>
    %cst_14 = arith.constant dense<0.000000e+00> : vector<16x128xf32>
    %16 = tpu.matmul %14, %15, %cst_14 {dimension_numbers = #tpu.dot_dimension_numbers<[1], [0], [0], [1], [0, 0, 1, 1], [], []>} : vector<16x128xbf16>, vector<128x128xbf16>, vector<16x128xf32> -> vector<16x128xf32>
    %c0_15 = arith.constant 0 : index
    %c0_16 = arith.constant 0 : index
    %c0_17 = arith.constant 0 : index
    %17 = vector.load %arg7[%c0_15, %c0_16, %c0_17] : memref<1x16x128xf32, #tpu.memory_space<vmem>>, vector<1x16x128xf32>
    %18 = vector.shape_cast %17 : vector<1x16x128xf32> to vector<16x128xf32>
    %19 = vector.shape_cast %16 : vector<16x128xf32> to vector<1x16x128xf32>
    tpu.vector_store %arg7[%c0_15, %c0_16, %c0_17], %19 {strides = array<i32>} : memref<1x16x128xf32, #tpu.memory_space<vmem>>, vector<1x16x128xf32>,
    return
  }
  func.func @transform_0(%arg0: i32) -> (i32, i32) {
    %c0_i32 = arith.constant 0 : i32
    %c0_i32_0 = arith.constant 0 : i32
    return %arg0, %c0_i32 : i32, i32
  }
  func.func @transform_1(%arg0: i32) -> (i32, i32) {
    %c0_i32 = arith.constant 0 : i32
    %c0_i32_0 = arith.constant 0 : i32
    %c0_i32_1 = arith.constant 0 : i32
    return %c0_i32, %c0_i32_0 : i32, i32
  }
  func.func @transform_2(%arg0: i32) -> (i32, i32) {
    %c0_i32 = arith.constant 0 : i32
    %c0_i32_0 = arith.constant 0 : i32
    %c0_i32_1 = arith.constant 0 : i32
    return %c0_i32, %c0_i32_0 : i32, i32
  }
  func.func @transform_3(%arg0: i32) -> (i32, i32) {
    %c0_i32 = arith.constant 0 : i32
    %c0_i32_0 = arith.constant 0 : i32
    %c0_i32_1 = arith.constant 0 : i32
    return %c0_i32, %c0_i32_0 : i32, i32
  }
  func.func @transform_4(%arg0: i32) -> (i32, i32) {
    %c0_i32 = arith.constant 0 : i32
    %c0_i32_0 = arith.constant 0 : i32
    return %c0_i32, %arg0 : i32, i32
  }
  func.func @transform_5(%arg0: i32) -> (i32, i32) {
    %c0_i32 = arith.constant 0 : i32
    %c0_i32_0 = arith.constant 0 : i32
    %c0_i32_1 = arith.constant 0 : i32
    return %c0_i32, %c0_i32_0 : i32, i32
  }
  func.func @transform_6(%arg0: i32) -> (i32, i32, i32) {
    %c0_i32 = arith.constant 0 : i32
    %c0_i32_0 = arith.constant 0 : i32
    %c0_i32_1 = arith.constant 0 : i32
    return %arg0, %c0_i32, %c0_i32_0 : i32, i32, i32
  }
}

</mosaic_0001>

<llo_original>
// kernel: tpu_custom_call.1
$region0: #{tpu_custom_call.1}
  #allocation0 [shape = 'u32[]', space=smem, size = 0x4, offset = 0x4, fixed_abs, tag = 'smem constant byte address 0x4 - core index']
  #allocation1 [shape = 'u32[144,128]{1,0:T(1,128)}', space=vmem, size = 0x12000, scoped, tag = 'internal scratch']
  %s0 = inlined_call_operand.hbm [shape: bf16[128,128], index: 0, kind: input, shape index: {}]
  %s1 = inlined_call_operand.hbm [shape: bf16[128,128], index: 1, kind: input, shape index: {}]
  %s2 = inlined_call_operand.hbm [shape: bf16[128,128], index: 2, kind: input, shape index: {}]
  %s3 = inlined_call_operand.vmem [shape: f32[1,128], index: 3, kind: input, shape index: {}]
  %s4 = inlined_call_operand.hbm [shape: bf16[16,128], index: 4, kind: input, shape index: {}]
  %s5 = inlined_call_operand.hbm [shape: bf16[128,128], index: 5, kind: input, shape index: {}]
  %s6 = inlined_call_operand.hbm [shape: f32[1,16,128], index: 6, kind: output, shape index: {}]
  %s7 = sld [smem:[#allocation0]]
  $region54: #{tpu_custom_call.1} parent=0
    _
  %s9 = ssub.s32 1, %s7
  %s10 = scalar_select 0, %s9, %s7
  $region1: #{tpu_custom_call.1} parent=0
    #allocation2 [shape = 'u8[32768]{0}', space=vmem, size = 0x8000, scoped, tag = 'input window, operand 0, single buffered']
    #allocation3 [shape = 's32[1]{0}', space=sflag, size = 0x4, scoped, tag = 'scoped memory for tpu_custom_call.1']
    #allocation4 [shape = 's32[1]{0}', space=sflag, size = 0x4, scoped, tag = 'scoped memory for tpu_custom_call.1']
    #allocation5 [shape = 'u8[32768]{0}', space=vmem, size = 0x8000, scoped, tag = 'input window, operand 1, single buffered']
    #allocation6 [shape = 's32[1]{0}', space=sflag, size = 0x4, scoped, tag = 'scoped memory for tpu_custom_call.1']
    #allocation7 [shape = 'u8[32768]{0}', space=vmem, size = 0x8000, scoped, tag = 'input window, operand 2, single buffered']
    #allocation8 [shape = 'u8[4096]{0}', space=vmem, size = 0x1000, scoped, tag = 'input window, operand 4, single buffered']
    #allocation9 [shape = 's32[1]{0}', space=sflag, size = 0x4, scoped, tag = 'scoped memory for tpu_custom_call.1']
    #allocation10 [shape = 'u8[32768]{0}', space=vmem, size = 0x8000, scoped, tag = 'input window, operand 5, single buffered']
    #allocation11 [shape = 'u8[8192]{0}', space=vmem, size = 0x2000, scoped, tag = 'output window, operand 0, single buffered']
    %11 = vsyncpa [#allocation3], 0
    %12 = vsyncpa [#allocation6], 0
    %13 = vsyncpa [#allocation9], 0
    %14 = vsyncpa [#allocation4], 0
    // Predicated region
    $region2: #{tpu_custom_call.1} parent=1 // pred_check
      _
    $region3: #{tpu_custom_call.1} parent=1 // pred_check_branch
      %16 = sbr.rel (0) target = $region5
    $region4: #{tpu_custom_call.1} parent=1 // pred_region
      %s18 = ssub.s32 1024, 1024
      %19 = vsyncadd [#allocation3], %s18
      %s20 = sshll.u32 [#allocation2], 4
      %s21 = int_to_ptr.vmem [resolvable:$true] %s20
      %26 = dma.hbm_to_vmem [thread:$0]  %s0, 1024, %s21, [#allocation3], 64, 64, 4
    $region5: #{tpu_custom_call.1} parent=1 // pred_fallthru
      _
    // Predicated region
    $region6: #{tpu_custom_call.1} parent=1 // pred_check
      _
    $region7: #{tpu_custom_call.1} parent=1 // pred_check_branch
      %28 = sbr.rel (0) target = $region9
    $region8: #{tpu_custom_call.1} parent=1 // pred_region
      %s30 = ssub.s32 1024, 1024
      %31 = vsyncadd [#allocation6], %s30
      %s32 = sshll.u32 [#allocation5], 4
      %s33 = int_to_ptr.vmem [resolvable:$true] %s32
      %38 = dma.hbm_to_vmem [thread:$0]  %s1, 1024, %s33, [#allocation6], 64, 64, 4
    $region9: #{tpu_custom_call.1} parent=1 // pred_fallthru
      _
    // Predicated region
    $region10: #{tpu_custom_call.1} parent=1 // pred_check
      _
    $region11: #{tpu_custom_call.1} parent=1 // pred_check_branch
      %40 = sbr.rel (0) target = $region13
    $region12: #{tpu_custom_call.1} parent=1 // pred_region
      %s42 = ssub.s32 1024, 1024
      %43 = vsyncadd [#allocation6], %s42
      %s44 = sshll.u32 [#allocation7], 4
      %s45 = int_to_ptr.vmem [resolvable:$true] %s44
      %50 = dma.hbm_to_vmem [thread:$0]  %s2, 1024, %s45, [#allocation6], 64, 64, 4
    $region13: #{tpu_custom_call.1} parent=1 // pred_fallthru
      _
    // Predicated region
    $region14: #{tpu_custom_call.1} parent=1 // pred_check
      _
    $region15: #{tpu_custom_call.1} parent=1 // pred_check_branch
      %52 = sbr.rel (0) target = $region17
    $region16: #{tpu_custom_call.1} parent=1 // pred_region
      _
    $region17: #{tpu_custom_call.1} parent=1 // pred_fallthru
      _
    // Predicated region
    $region18: #{tpu_custom_call.1} parent=1 // pred_check
      _
    $region19: #{tpu_custom_call.1} parent=1 // pred_check_branch
      %54 = sbr.rel (0) target = $region21
    $region20: #{tpu_custom_call.1} parent=1 // pred_region
      %s56 = ssub.s32 128, 128
      %57 = vsyncadd [#allocation9], %s56
      %s58 = sshll.u32 [#allocation8], 4
      %s59 = int_to_ptr.vmem [resolvable:$true] %s58
      %64 = dma.hbm_to_vmem [thread:$0]  %s4, 128, %s59, [#allocation9], 64, 64, 4
    $region21: #{tpu_custom_call.1} parent=1 // pred_fallthru
      _
    // Predicated region
    $region22: #{tpu_custom_call.1} parent=1 // pred_check
      _
    $region23: #{tpu_custom_call.1} parent=1 // pred_check_branch
      %66 = sbr.rel (0) target = $region25
    $region24: #{tpu_custom_call.1} parent=1 // pred_region
      %s68 = ssub.s32 1024, 1024
      %69 = vsyncadd [#allocation9], %s68
      %s70 = sshll.u32 [#allocation10], 4
      %s71 = int_to_ptr.vmem [resolvable:$true] %s70
      %76 = dma.hbm_to_vmem [thread:$0]  %s5, 1024, %s71, [#allocation9], 64, 64, 4
    $region25: #{tpu_custom_call.1} parent=1 // pred_fallthru
      _
    // Predicated region
    $region26: #{tpu_custom_call.1} parent=1 // pred_check
      _
    $region27: #{tpu_custom_call.1} parent=1 // pred_check_branch
      %78 = sbr.rel (0) target = $region29
    $region28: #{tpu_custom_call.1} parent=1 // pred_region
      %79 = dma.done [#allocation3], 1024
    $region29: #{tpu_custom_call.1} parent=1 // pred_fallthru
      _
    // Predicated region
    $region30: #{tpu_custom_call.1} parent=1 // pred_check
      _
    $region31: #{tpu_custom_call.1} parent=1 // pred_check_branch
      %81 = sbr.rel (0) target = $region33
    $region32: #{tpu_custom_call.1} parent=1 // pred_region
      %82 = dma.done [#allocation6], 1024
    $region33: #{tpu_custom_call.1} parent=1 // pred_fallthru
      _
    // Predicated region
    $region34: #{tpu_custom_call.1} parent=1 // pred_check
      _
    $region35: #{tpu_custom_call.1} parent=1 // pred_check_branch
      %84 = sbr.rel (0) target = $region37
    $region36: #{tpu_custom_call.1} parent=1 // pred_region
      %85 = dma.done [#allocation6], 1024
    $region37: #{tpu_custom_call.1} parent=1 // pred_fallthru
      _
    // Predicated region
    $region38: #{tpu_custom_call.1} parent=1 // pred_check
      _
    $region39: #{tpu_custom_call.1} parent=1 // pred_check_branch
      %87 = sbr.rel (0) target = $region41
    $region40: #{tpu_custom_call.1} parent=1 // pred_region
      %88 = dma.done [#allocation9], 128
    $region41: #{tpu_custom_call.1} parent=1 // pred_fallthru
      _
    // Predicated region
    $region42: #{tpu_custom_call.1} parent=1 // pred_check
      _
    $region43: #{tpu_custom_call.1} parent=1 // pred_check_branch
      %90 = sbr.rel (0) target = $region45
    $region44: #{tpu_custom_call.1} parent=1 // pred_region
      %91 = dma.done [#allocation9], 1024
    $region45: #{tpu_custom_call.1} parent=1 // pred_fallthru
      _
    %v93 = vld [vmem:[#allocation2] sm:$0xf]
    %v94 = vld [vmem:[#allocation2 + $0x4] sm:$0xf]
    %v95 = vld [vmem:[#allocation2 + $0x8] sm:$0xf]
    %v96 = vld [vmem:[#allocation2 + $0xc] sm:$0xf]
    %v97 = vld [vmem:[#allocation2 + $0x10] sm:$0xf]
    %v98 = vld [vmem:[#allocation2 + $0x14] sm:$0xf]
    %v99 = vld [vmem:[#allocation2 + $0x18] sm:$0xf]
    %v100 = vld [vmem:[#allocation2 + $0x1c] sm:$0xf]
    %v101 = vld [vmem:[#allocation2 + $0x20] sm:$0xf]
    %v102 = vld [vmem:[#allocation2 + $0x24] sm:$0xf]
    %v103 = vld [vmem:[#allocation2 + $0x28] sm:$0xf]
    %v104 = vld [vmem:[#allocation2 + $0x2c] sm:$0xf]
    %v105 = vld [vmem:[#allocation2 + $0x30] sm:$0xf]
    %v106 = vld [vmem:[#allocation2 + $0x34] sm:$0xf]
    %v107 = vld [vmem:[#allocation2 + $0x38] sm:$0xf]
    %v108 = vld [vmem:[#allocation2 + $0x3c] sm:$0xf]
    %v109 = vld [vmem:[#allocation5] sm:$0xf]
    %v110 = vld [vmem:[#allocation5 + $0x4] sm:$0xf]
    %v111 = vld [vmem:[#allocation5 + $0x8] sm:$0xf]
    %v112 = vld [vmem:[#allocation5 + $0xc] sm:$0xf]
    %v113 = vld [vmem:[#allocation5 + $0x10] sm:$0xf]
    %v114 = vld [vmem:[#allocation5 + $0x14] sm:$0xf]
    %v115 = vld [vmem:[#allocation5 + $0x18] sm:$0xf]
    %v116 = vld [vmem:[#allocation5 + $0x1c] sm:$0xf]
    %v117 = vld [vmem:[#allocation5 + $0x20] sm:$0xf]
    %v118 = vld [vmem:[#allocation5 + $0x24] sm:$0xf]
    %v119 = vld [vmem:[#allocation5 + $0x28] sm:$0xf]
    %v120 = vld [vmem:[#allocation5 + $0x2c] sm:$0xf]
    %v121 = vld [vmem:[#allocation5 + $0x30] sm:$0xf]
    %v122 = vld [vmem:[#allocation5 + $0x34] sm:$0xf]
    %v123 = vld [vmem:[#allocation5 + $0x38] sm:$0xf]
    %v124 = vld [vmem:[#allocation5 + $0x3c] sm:$0xf]
    %v141 = vunpack.c.l.b16 %v93
    %v142 = vunpack.c.l.b16 %v94
    %v143 = vunpack.c.l.b16 %v95
    %v144 = vunpack.c.l.b16 %v96
    %v145 = vunpack.c.l.b16 %v97
    %v146 = vunpack.c.l.b16 %v98
    %v147 = vunpack.c.l.b16 %v99
    %v148 = vunpack.c.l.b16 %v100
    %v149 = vunpack.c.l.b16 %v101
    %v150 = vunpack.c.l.b16 %v102
    %v151 = vunpack.c.l.b16 %v103
    %v152 = vunpack.c.l.b16 %v104
    %v153 = vunpack.c.l.b16 %v105
    %v154 = vunpack.c.l.b16 %v106
    %v155 = vunpack.c.l.b16 %v107
    %v156 = vunpack.c.l.b16 %v108
    %v157 = vpack.c.b16 %v142, %v141
    %v158 = vpack.c.b16 %v144, %v143
    %v159 = vpack.c.b16 %v146, %v145
    %v160 = vpack.c.b16 %v148, %v147
    %v161 = vpack.c.b16 %v150, %v149
    %v162 = vpack.c.b16 %v152, %v151
    %v163 = vpack.c.b16 %v154, %v153
    %v164 = vpack.c.b16 %v156, %v155
    %v189 = vunpack.c.l.b16 %v109
    %v190 = vunpack.c.l.b16 %v110
    %v191 = vunpack.c.l.b16 %v111
    %v192 = vunpack.c.l.b16 %v112
    %v193 = vunpack.c.l.b16 %v113
    %v194 = vunpack.c.l.b16 %v114
    %v195 = vunpack.c.l.b16 %v115
    %v196 = vunpack.c.l.b16 %v116
    %v197 = vunpack.c.l.b16 %v117
    %v198 = vunpack.c.l.b16 %v118
    %v199 = vunpack.c.l.b16 %v119
    %v200 = vunpack.c.l.b16 %v120
    %v201 = vunpack.c.l.b16 %v121
    %v202 = vunpack.c.l.b16 %v122
    %v203 = vunpack.c.l.b16 %v123
    %v204 = vunpack.c.l.b16 %v124
    %v205 = vpack.c.b16 %v190, %v189
    %v206 = vpack.c.b16 %v192, %v191
    %v207 = vpack.c.b16 %v194, %v193
    %v208 = vpack.c.b16 %v196, %v195
    %v209 = vpack.c.b16 %v198, %v197
    %v210 = vpack.c.b16 %v200, %v199
    %v211 = vpack.c.b16 %v202, %v201
    %v212 = vpack.c.b16 %v204, %v203
    %221 = vmatprep.subr.bf16.mxu0 0
    %222 = vmatpush1.bf16.msra.mxu0 %v212
    %223 = vmatprep.subr.bf16.mxu0 0
    %224 = vmatpush1.bf16.msra.mxu0 %v211
    %225 = vmatprep.subr.bf16.mxu0 0
    %226 = vmatpush1.bf16.msra.mxu0 %v210
    %227 = vmatprep.subr.bf16.mxu0 0
    %228 = vmatpush1.bf16.msra.mxu0 %v209
    %229 = vmatprep.subr.bf16.mxu0 0
    %230 = vmatpush1.bf16.msra.mxu0 %v208
    %231 = vmatprep.subr.bf16.mxu0 0
    %232 = vmatpush1.bf16.msra.mxu0 %v207
    %233 = vmatprep.subr.bf16.mxu0 0
    %234 = vmatpush1.bf16.msra.mxu0 %v206
    %235 = vmatprep.subr.bf16.mxu0 0
    %236 = vmatpush1.bf16.msra.mxu0 %v205
    %237 = vmatprep.subr.bf16.mxu0 0
    %238 = vmatpush2.bf16.msra.mxu0 0
    %239 = vmatprep.subr.bf16.mxu0 0
    %240 = vmatpush2.bf16.msra.mxu0 0
    %241 = vmatprep.subr.bf16.mxu0 0
    %242 = vmatpush2.bf16.msra.mxu0 0
    %243 = vmatprep.subr.bf16.mxu0 0
    %244 = vmatpush2.bf16.msra.mxu0 0
    %245 = vmatprep.subr.bf16.mxu0 0
    %246 = vmatpush2.bf16.msra.mxu0 0
    %247 = vmatprep.subr.bf16.mxu0 0
    %248 = vmatpush2.bf16.msra.mxu0 0
    %249 = vmatprep.subr.bf16.mxu0 0
    %250 = vmatpush2.bf16.msra.mxu0 0
    %251 = vmatprep.subr.bf16.mxu0 0
    %252 = vmatpush2.bf16.msra.mxu0 0
    %253 = vmatprep.mubr.bf16.mxu0 0
    %254 = vmatmul.mubr.bf16.gmra.mxu0 %v157
    %v255 = vpop.f32.mrf.mxu0
    %v256 = vadd.f32 0.0, %v255
    %v257 = vpop.f32.mrf.mxu0
    %v258 = vpop.f32.mrf.mxu0
    %v259 = vadd.f32 0.0, %v258
    %v260 = vpop.f32.mrf.mxu0
    %261 = vmatprep.mubr.bf16.mxu0 0
    %262 = vmatmul.mubr.bf16.gmra.mxu0 %v158
    %v263 = vpop.f32.mrf.mxu0
    %v264 = vadd.f32 0.0, %v263
    %v265 = vpop.f32.mrf.mxu0
    %v266 = vpop.f32.mrf.mxu0
    %v267 = vadd.f32 0.0, %v266
    %v268 = vpop.f32.mrf.mxu0
    %269 = vmatprep.mubr.bf16.mxu0 0
    %270 = vmatmul.mubr.bf16.gmra.mxu0 %v159
    %v271 = vpop.f32.mrf.mxu0
    %v272 = vadd.f32 0.0, %v271
    %v273 = vpop.f32.mrf.mxu0
    %v274 = vpop.f32.mrf.mxu0
    %v275 = vadd.f32 0.0, %v274
    %v276 = vpop.f32.mrf.mxu0
    %277 = vmatprep.mubr.bf16.mxu0 0
    %278 = vmatmul.mubr.bf16.gmra.mxu0 %v160
    %v279 = vpop.f32.mrf.mxu0
    %v280 = vadd.f32 0.0, %v279
    %v281 = vpop.f32.mrf.mxu0
    %v282 = vpop.f32.mrf.mxu0
    %v283 = vadd.f32 0.0, %v282
    %v284 = vpop.f32.mrf.mxu0
    %285 = vmatprep.mubr.bf16.mxu0 0
    %286 = vmatmul.mubr.bf16.gmra.mxu0 %v161
    %v287 = vpop.f32.mrf.mxu0
    %v288 = vadd.f32 0.0, %v287
    %v289 = vpop.f32.mrf.mxu0
    %v290 = vpop.f32.mrf.mxu0
    %v291 = vadd.f32 0.0, %v290
    %v292 = vpop.f32.mrf.mxu0
    %293 = vmatprep.mubr.bf16.mxu0 0
    %294 = vmatmul.mubr.bf16.gmra.mxu0 %v162
    %v295 = vpop.f32.mrf.mxu0
    %v296 = vadd.f32 0.0, %v295
    %v297 = vpop.f32.mrf.mxu0
    %v298 = vpop.f32.mrf.mxu0
    %v299 = vadd.f32 0.0, %v298
    %v300 = vpop.f32.mrf.mxu0
    %301 = vmatprep.mubr.bf16.mxu0 0
    %302 = vmatmul.mubr.bf16.gmra.mxu0 %v163
    %v303 = vpop.f32.mrf.mxu0
    %v304 = vadd.f32 0.0, %v303
    %v305 = vpop.f32.mrf.mxu0
    %v306 = vpop.f32.mrf.mxu0
    %v307 = vadd.f32 0.0, %v306
    %v308 = vpop.f32.mrf.mxu0
    %309 = vmatprep.mubr.bf16.mxu0 0
    %310 = vmatmul.mubr.bf16.gmra.mxu0 %v164
    %v311 = vpop.f32.mrf.mxu0
    %v312 = vadd.f32 0.0, %v311
    %v313 = vpop.f32.mrf.mxu0
    %v314 = vpop.f32.mrf.mxu0
    %v315 = vadd.f32 0.0, %v314
    %v316 = vpop.f32.mrf.mxu0
    %317 = vdwg.mxu0
    %v318 = vpack.c.bf16 %v259, %v256
    %v319 = vpack.c.bf16 %v267, %v264
    %v320 = vpack.c.bf16 %v275, %v272
    %v321 = vpack.c.bf16 %v283, %v280
    %v322 = vpack.c.bf16 %v291, %v288
    %v323 = vpack.c.bf16 %v299, %v296
    %v324 = vpack.c.bf16 %v307, %v304
    %v325 = vpack.c.bf16 %v315, %v312
    %v326 = vld [vmem:[#allocation7] sm:$0xf]
    %v327 = vld [vmem:[#allocation7 + $0x4] sm:$0xf]
    %v328 = vld [vmem:[#allocation7 + $0x8] sm:$0xf]
    %v329 = vld [vmem:[#allocation7 + $0xc] sm:$0xf]
    %v330 = vld [vmem:[#allocation7 + $0x10] sm:$0xf]
    %v331 = vld [vmem:[#allocation7 + $0x14] sm:$0xf]
    %v332 = vld [vmem:[#allocation7 + $0x18] sm:$0xf]
    %v333 = vld [vmem:[#allocation7 + $0x1c] sm:$0xf]
    %v334 = vld [vmem:[#allocation7 + $0x20] sm:$0xf]
    %v335 = vld [vmem:[#allocation7 + $0x24] sm:$0xf]
    %v336 = vld [vmem:[#allocation7 + $0x28] sm:$0xf]
    %v337 = vld [vmem:[#allocation7 + $0x2c] sm:$0xf]
    %v338 = vld [vmem:[#allocation7 + $0x30] sm:$0xf]
    %v339 = vld [vmem:[#allocation7 + $0x34] sm:$0xf]
    %v340 = vld [vmem:[#allocation7 + $0x38] sm:$0xf]
    %v341 = vld [vmem:[#allocation7 + $0x3c] sm:$0xf]
    %v342 = vld [vmem:[%s3] sm:$0x1]
    %v344 = vlaneseq
    %v345 = vshrl.u32 %v344, 7
    %v346 = vsub.s32 0, %v345
    %v347 = vrot.slane %v342, %v346
    %v365 = vunpack.c.l.b16 %v326
    %v366 = vunpack.c.l.b16 %v327
    %v367 = vunpack.c.l.b16 %v328
    %v368 = vunpack.c.l.b16 %v329
    %v369 = vunpack.c.l.b16 %v330
    %v370 = vunpack.c.l.b16 %v331
    %v371 = vunpack.c.l.b16 %v332
    %v372 = vunpack.c.l.b16 %v333
    %v373 = vunpack.c.l.b16 %v334
    %v374 = vunpack.c.l.b16 %v335
    %v375 = vunpack.c.l.b16 %v336
    %v376 = vunpack.c.l.b16 %v337
    %v377 = vunpack.c.l.b16 %v338
    %v378 = vunpack.c.l.b16 %v339
    %v379 = vunpack.c.l.b16 %v340
    %v380 = vunpack.c.l.b16 %v341
    %v381 = vpack.c.b16 %v366, %v365
    %v382 = vpack.c.b16 %v368, %v367
    %v383 = vpack.c.b16 %v370, %v369
    %v384 = vpack.c.b16 %v372, %v371
    %v385 = vpack.c.b16 %v374, %v373
    %v386 = vpack.c.b16 %v376, %v375
    %v387 = vpack.c.b16 %v378, %v377
    %v388 = vpack.c.b16 %v380, %v379
    %397 = vmatprep.subr.bf16.mxu0 0
    %398 = vmatpush1.bf16.msra.mxu0 %v388
    %399 = vmatprep.subr.bf16.mxu0 0
    %400 = vmatpush1.bf16.msra.mxu0 %v387
    %401 = vmatprep.subr.bf16.mxu0 0
    %402 = vmatpush1.bf16.msra.mxu0 %v386
    %403 = vmatprep.subr.bf16.mxu0 0
    %404 = vmatpush1.bf16.msra.mxu0 %v385
    %405 = vmatprep.subr.bf16.mxu0 0
    %406 = vmatpush1.bf16.msra.mxu0 %v384
    %407 = vmatprep.subr.bf16.mxu0 0
    %408 = vmatpush1.bf16.msra.mxu0 %v383
    %409 = vmatprep.subr.bf16.mxu0 0
    %410 = vmatpush1.bf16.msra.mxu0 %v382
    %411 = vmatprep.subr.bf16.mxu0 0
    %412 = vmatpush1.bf16.msra.mxu0 %v381
    %413 = vmatprep.subr.bf16.mxu0 0
    %414 = vmatpush2.bf16.msra.mxu0 0
    %415 = vmatprep.subr.bf16.mxu0 0
    %416 = vmatpush2.bf16.msra.mxu0 0
    %417 = vmatprep.subr.bf16.mxu0 0
    %418 = vmatpush2.bf16.msra.mxu0 0
    %419 = vmatprep.subr.bf16.mxu0 0
    %420 = vmatpush2.bf16.msra.mxu0 0
    %421 = vmatprep.subr.bf16.mxu0 0
    %422 = vmatpush2.bf16.msra.mxu0 0
    %423 = vmatprep.subr.bf16.mxu0 0
    %424 = vmatpush2.bf16.msra.mxu0 0
    %425 = vmatprep.subr.bf16.mxu0 0
    %426 = vmatpush2.bf16.msra.mxu0 0
    %427 = vmatprep.subr.bf16.mxu0 0
    %428 = vmatpush2.bf16.msra.mxu0 0
    %429 = vmatprep.mubr.bf16.mxu0 0
    %430 = vmatmul.mubr.bf16.gmra.mxu0 %v318
    %v431 = vpop.f32.mrf.mxu0
    %v432 = vadd.f32 %v347, %v431
    %v433 = vpop.f32.mrf.mxu0
    %v434 = vpop.f32.mrf.mxu0
    %v435 = vadd.f32 %v347, %v434
    %v436 = vpop.f32.mrf.mxu0
    %437 = vmatprep.mubr.bf16.mxu0 0
    %438 = vmatmul.mubr.bf16.gmra.mxu0 %v319
    %v439 = vpop.f32.mrf.mxu0
    %v440 = vadd.f32 %v347, %v439
    %v441 = vpop.f32.mrf.mxu0
    %v442 = vpop.f32.mrf.mxu0
    %v443 = vadd.f32 %v347, %v442
    %v444 = vpop.f32.mrf.mxu0
    %445 = vmatprep.mubr.bf16.mxu0 0
    %446 = vmatmul.mubr.bf16.gmra.mxu0 %v320
    %v447 = vpop.f32.mrf.mxu0
    %v448 = vadd.f32 %v347, %v447
    %v449 = vpop.f32.mrf.mxu0
    %v450 = vpop.f32.mrf.mxu0
    %v451 = vadd.f32 %v347, %v450
    %v452 = vpop.f32.mrf.mxu0
    %453 = vmatprep.mubr.bf16.mxu0 0
    %454 = vmatmul.mubr.bf16.gmra.mxu0 %v321
    %v455 = vpop.f32.mrf.mxu0
    %v456 = vadd.f32 %v347, %v455
    %v457 = vpop.f32.mrf.mxu0
    %v458 = vpop.f32.mrf.mxu0
    %v459 = vadd.f32 %v347, %v458
    %v460 = vpop.f32.mrf.mxu0
    %461 = vmatprep.mubr.bf16.mxu0 0
    %462 = vmatmul.mubr.bf16.gmra.mxu0 %v322
    %v463 = vpop.f32.mrf.mxu0
    %v464 = vadd.f32 %v347, %v463
    %v465 = vpop.f32.mrf.mxu0
    %v466 = vpop.f32.mrf.mxu0
    %v467 = vadd.f32 %v347, %v466
    %v468 = vpop.f32.mrf.mxu0
    %469 = vmatprep.mubr.bf16.mxu0 0
    %470 = vmatmul.mubr.bf16.gmra.mxu0 %v323
    %v471 = vpop.f32.mrf.mxu0
    %v472 = vadd.f32 %v347, %v471
    %v473 = vpop.f32.mrf.mxu0
    %v474 = vpop.f32.mrf.mxu0
    %v475 = vadd.f32 %v347, %v474
    %v476 = vpop.f32.mrf.mxu0
    %477 = vmatprep.mubr.bf16.mxu0 0
    %478 = vmatmul.mubr.bf16.gmra.mxu0 %v324
    %v479 = vpop.f32.mrf.mxu0
    %v480 = vadd.f32 %v347, %v479
    %v481 = vpop.f32.mrf.mxu0
    %v482 = vpop.f32.mrf.mxu0
    %v483 = vadd.f32 %v347, %v482
    %v484 = vpop.f32.mrf.mxu0
    %485 = vmatprep.mubr.bf16.mxu0 0
    %486 = vmatmul.mubr.bf16.gmra.mxu0 %v325
    %v487 = vpop.f32.mrf.mxu0
    %v488 = vadd.f32 %v347, %v487
    %v489 = vpop.f32.mrf.mxu0
    %v490 = vpop.f32.mrf.mxu0
    %v491 = vadd.f32 %v347, %v490
    %v492 = vpop.f32.mrf.mxu0
    %493 = vdwg.mxu0
    %v494 = vmax.f32 %v432, 0.0
    %v495 = vmax.f32 %v435, 0.0
    %v496 = vmax.f32 %v440, 0.0
    %v497 = vmax.f32 %v443, 0.0
    %v498 = vmax.f32 %v448, 0.0
    %v499 = vmax.f32 %v451, 0.0
    %v500 = vmax.f32 %v456, 0.0
    %v501 = vmax.f32 %v459, 0.0
    %v502 = vmax.f32 %v464, 0.0
    %v503 = vmax.f32 %v467, 0.0
    %v504 = vmax.f32 %v472, 0.0
    %v505 = vmax.f32 %v475, 0.0
    %v506 = vmax.f32 %v480, 0.0
    %v507 = vmax.f32 %v483, 0.0
    %v508 = vmax.f32 %v488, 0.0
    %v509 = vmax.f32 %v491, 0.0
    %v510 = vld [vmem:[#allocation8] sm:$0xf]
    %v511 = vld [vmem:[#allocation8 + $0x4] sm:$0xf]
    %v512 = vpack.c.bf16 %v495, %v494
    %v513 = vpack.c.bf16 %v497, %v496
    %v514 = vpack.c.bf16 %v499, %v498
    %v515 = vpack.c.bf16 %v501, %v500
    %v516 = vpack.c.bf16 %v503, %v502
    %v517 = vpack.c.bf16 %v505, %v504
    %v518 = vpack.c.bf16 %v507, %v506
    %v519 = vpack.c.bf16 %v509, %v508
    %v522 = vunpack.c.l.b16 %v510
    %v523 = vunpack.c.l.b16 %v511
    %v524 = vpack.c.b16 %v523, %v522
    %526 = vmatprep.subr.bf16.mxu0 0
    %527 = vmatpush1.bf16.msra.mxu0 %v519
    %528 = vmatprep.subr.bf16.mxu0 0
    %529 = vmatpush1.bf16.msra.mxu0 %v518
    %530 = vmatprep.subr.bf16.mxu0 0
    %531 = vmatpush1.bf16.msra.mxu0 %v517
    %532 = vmatprep.subr.bf16.mxu0 0
    %533 = vmatpush1.bf16.msra.mxu0 %v516
    %534 = vmatprep.subr.bf16.mxu0 0
    %535 = vmatpush1.bf16.msra.mxu0 %v515
    %536 = vmatprep.subr.bf16.mxu0 0
    %537 = vmatpush1.bf16.msra.mxu0 %v514
    %538 = vmatprep.subr.bf16.mxu0 0
    %539 = vmatpush1.bf16.msra.mxu0 %v513
    %540 = vmatprep.subr.bf16.mxu0 0
    %541 = vmatpush1.bf16.msra.mxu0 %v512
    %542 = vmatprep.subr.bf16.mxu0 0
    %543 = vmatpush2.bf16.msra.mxu0 0
    %544 = vmatprep.subr.bf16.mxu0 0
    %545 = vmatpush2.bf16.msra.mxu0 0
    %546 = vmatprep.subr.bf16.mxu0 0
    %547 = vmatpush2.bf16.msra.mxu0 0
    %548 = vmatprep.subr.bf16.mxu0 0
    %549 = vmatpush2.bf16.msra.mxu0 0
    %550 = vmatprep.subr.bf16.mxu0 0
    %551 = vmatpush2.bf16.msra.mxu0 0
    %552 = vmatprep.subr.bf16.mxu0 0
    %553 = vmatpush2.bf16.msra.mxu0 0
    %554 = vmatprep.subr.bf16.mxu0 0
    %555 = vmatpush2.bf16.msra.mxu0 0
    %556 = vmatprep.subr.bf16.mxu0 0
    %557 = vmatpush2.bf16.msra.mxu0 0
    %558 = vmatprep.mubr.bf16.mxu0 0
    %559 = vmatmul.mubr.bf16.gmra.mxu0 %v524
    %v560 = vpop.f32.mrf.mxu0
    %v561 = vadd.f32 0.0, %v560
    %v562 = vpop.f32.mrf.mxu0
    %v563 = vpop.f32.mrf.mxu0
    %v564 = vadd.f32 0.0, %v563
    %v565 = vpop.f32.mrf.mxu0
    %566 = vdwg.mxu0
    %v567 = vpack.c.bf16 %v564, %v561
    %v568 = vld [vmem:[#allocation10] sm:$0xf]
    %v569 = vld [vmem:[#allocation10 + $0x4] sm:$0xf]
    %v570 = vld [vmem:[#allocation10 + $0x8] sm:$0xf]
    %v571 = vld [vmem:[#allocation10 + $0xc] sm:$0xf]
    %v572 = vld [vmem:[#allocation10 + $0x10] sm:$0xf]
    %v573 = vld [vmem:[#allocation10 + $0x14] sm:$0xf]
    %v574 = vld [vmem:[#allocation10 + $0x18] sm:$0xf]
    %v575 = vld [vmem:[#allocation10 + $0x1c] sm:$0xf]
    %v576 = vld [vmem:[#allocation10 + $0x20] sm:$0xf]
    %v577 = vld [vmem:[#allocation10 + $0x24] sm:$0xf]
    %v578 = vld [vmem:[#allocation10 + $0x28] sm:$0xf]
    %v579 = vld [vmem:[#allocation10 + $0x2c] sm:$0xf]
    %v580 = vld [vmem:[#allocation10 + $0x30] sm:$0xf]
    %v581 = vld [vmem:[#allocation10 + $0x34] sm:$0xf]
    %v582 = vld [vmem:[#allocation10 + $0x38] sm:$0xf]
    %v583 = vld [vmem:[#allocation10 + $0x3c] sm:$0xf]
    %v600 = vunpack.c.l.b16 %v568
    %v601 = vunpack.c.l.b16 %v569
    %v602 = vunpack.c.l.b16 %v570
    %v603 = vunpack.c.l.b16 %v571
    %v604 = vunpack.c.l.b16 %v572
    %v605 = vunpack.c.l.b16 %v573
    %v606 = vunpack.c.l.b16 %v574
    %v607 = vunpack.c.l.b16 %v575
    %v608 = vunpack.c.l.b16 %v576
    %v609 = vunpack.c.l.b16 %v577
    %v610 = vunpack.c.l.b16 %v578
    %v611 = vunpack.c.l.b16 %v579
    %v612 = vunpack.c.l.b16 %v580
    %v613 = vunpack.c.l.b16 %v581
    %v614 = vunpack.c.l.b16 %v582
    %v615 = vunpack.c.l.b16 %v583
    %v616 = vpack.c.b16 %v601, %v600
    %v617 = vpack.c.b16 %v603, %v602
    %v618 = vpack.c.b16 %v605, %v604
    %v619 = vpack.c.b16 %v607, %v606
    %v620 = vpack.c.b16 %v609, %v608
    %v621 = vpack.c.b16 %v611, %v610
    %v622 = vpack.c.b16 %v613, %v612
    %v623 = vpack.c.b16 %v615, %v614
    %632 = vmatprep.subr.bf16.mxu0 0
    %633 = vmatpush1.bf16.msra.mxu0 %v623
    %634 = vmatprep.subr.bf16.mxu0 0
    %635 = vmatpush1.bf16.msra.mxu0 %v622
    %636 = vmatprep.subr.bf16.mxu0 0
    %637 = vmatpush1.bf16.msra.mxu0 %v621
    %638 = vmatprep.subr.bf16.mxu0 0
    %639 = vmatpush1.bf16.msra.mxu0 %v620
    %640 = vmatprep.subr.bf16.mxu0 0
    %641 = vmatpush1.bf16.msra.mxu0 %v619
    %642 = vmatprep.subr.bf16.mxu0 0
    %643 = vmatpush1.bf16.msra.mxu0 %v618
    %644 = vmatprep.subr.bf16.mxu0 0
    %645 = vmatpush1.bf16.msra.mxu0 %v617
    %646 = vmatprep.subr.bf16.mxu0 0
    %647 = vmatpush1.bf16.msra.mxu0 %v616
    %648 = vmatprep.subr.bf16.mxu0 0
    %649 = vmatpush2.bf16.msra.mxu0 0
    %650 = vmatprep.subr.bf16.mxu0 0
    %651 = vmatpush2.bf16.msra.mxu0 0
    %652 = vmatprep.subr.bf16.mxu0 0
    %653 = vmatpush2.bf16.msra.mxu0 0
    %654 = vmatprep.subr.bf16.mxu0 0
    %655 = vmatpush2.bf16.msra.mxu0 0
    %656 = vmatprep.subr.bf16.mxu0 0
    %657 = vmatpush2.bf16.msra.mxu0 0
    %658 = vmatprep.subr.bf16.mxu0 0
    %659 = vmatpush2.bf16.msra.mxu0 0
    %660 = vmatprep.subr.bf16.mxu0 0
    %661 = vmatpush2.bf16.msra.mxu0 0
    %662 = vmatprep.subr.bf16.mxu0 0
    %663 = vmatpush2.bf16.msra.mxu0 0
    %664 = vmatprep.mubr.bf16.mxu0 0
    %665 = vmatmul.mubr.bf16.gmra.mxu0 %v567
    %v666 = vpop.f32.mrf.mxu0
    %v667 = vadd.f32 0.0, %v666
    %v668 = vpop.f32.mrf.mxu0
    %v669 = vpop.f32.mrf.mxu0
    %v670 = vadd.f32 0.0, %v669
    %v671 = vpop.f32.mrf.mxu0
    %672 = vdwg.mxu0
    %673 = vst [vmem:[#allocation11] sm:$0xff] %v667
    %674 = vst [vmem:[#allocation11 + $0x8] sm:$0xff] %v670
    // Predicated region
    $region46: #{tpu_custom_call.1} parent=1 // pred_check
      _
    $region47: #{tpu_custom_call.1} parent=1 // pred_check_branch
      %676 = sbr.rel (0) target = $region49
    $region48: #{tpu_custom_call.1} parent=1 // pred_region
      %s678 = ssub.s32 256, 256
      %679 = vsyncadd [#allocation4], %s678
      %s680 = sshll.u32 [#allocation11], 4
      %s681 = int_to_ptr.vmem [resolvable:$true] %s680
      %686 = dma.vmem_to_hbm [thread:$0]  %s681, 256, %s6, [#allocation4], 128, 128, 8
    $region49: #{tpu_custom_call.1} parent=1 // pred_fallthru
      _
    // Predicated region
    $region50: #{tpu_custom_call.1} parent=1 // pred_check
      _
    $region51: #{tpu_custom_call.1} parent=1 // pred_check_branch
      %688 = sbr.rel (0) target = $region53
    $region52: #{tpu_custom_call.1} parent=1 // pred_region
      %689 = dma.done [#allocation4], 256
    $region53: #{tpu_custom_call.1} parent=1 // pred_fallthru
      _
    %690 = vsyncpa [#allocation3], 1
    %691 = vsyncpa [#allocation6], 1
    %692 = vsyncpa [#allocation9], 1
    %693 = vsyncpa [#allocation4], 1

</llo_original>
